<compile_context>
chip_gen: v6e
topology: v6e:2x2x1
jax: 0.10.0
libtpu: 0.0.40
codegen_flags: <defaults>
</compile_context>

<pallas_src>
import jax
import jax.numpy as jnp
import numpy as np
from jax import lax
from jax.experimental import pallas as pl
from jax.experimental.pallas import tpu as pltpu


def _bilinear_seq_attn_kernel(wy_ref, x_ref, mb_ref, o_ref):
    # Grid: (batch_tile b, seq_tile l); l is innermost (reduction axis).
    l = pl.program_id(1)

    @pl.when(l == 0)
    def _init():
        # Running-max accumulator lives in the resident output block.
        o_ref[...] = jnp.full(o_ref.shape, -jnp.inf, dtype=o_ref.dtype)

    x = x_ref[...]                                    # (TB, TL, H), native dtype
    wy = wy_ref[...].astype(x.dtype)                  # (TB, 1,  H)
    # MXU batched contraction over H (decode-attention shape, q == 1):
    #   scores[b, 0, t] = sum_h Wy[b, h] * x[b, t, h]
    scores = jnp.einsum(
        "bqh,blh->bql", wy, x, preferred_element_type=jnp.float32
    )                                                 # (TB, 1, TL) f32
    # Additive mask bias: 0 for kept positions, -inf for masked / padded ones.
    scores = scores + mb_ref[...].astype(jnp.float32)
    o_ref[...] = jnp.maximum(
        o_ref[...], jnp.max(scores, axis=-1, keepdims=True)
    )


def bilinear_seq_attn(x, y, x_mask, weight, bias, *, tile_b=None, tile_l=None,
                      x_tile_budget_bytes=4 * 1024 * 1024):
    """Forward of BilinearSeqAttn.

    x:      (B, L, x_size)   float32 or bfloat16
    y:      (B, y_size)
    x_mask: (B, L) bool, True = masked
    weight: (x_size, y_size)   (nn.Linear(y_size, x_size).weight)
    bias:   (x_size,)          (nn.Linear(y_size, x_size).bias)
    Returns (B,) float32 = max_l over unmasked positions of x[:, l] . (W y + b)
    """
    B, L, H = x.shape
    Hy = y.shape[-1]
    assert weight.shape == (H, Hy)
    assert bias.shape == (H,)
    assert x_mask.shape == (B, L)

    # --- Wy = y @ W^T + b : tiny (B x H), computed in f32 outside the kernel --
    wy = (
        jnp.dot(y.astype(jnp.float32), weight.astype(jnp.float32).T,
                precision=lax.Precision.HIGHEST)
        + bias.astype(jnp.float32)[None, :]
    )  # (B, H)

    x_bytes = jnp.dtype(x.dtype).itemsize

    # --- tile sizing ----------------------------------------------------------
    if tile_b is None:
        # 8-sublane friendly; for B > 8 this also guarantees >= 2 "parallel"
        # batch tiles so both v7x TensorCores are used.
        tile_b = B if B <= 8 else 8
    if tile_l is None:
        # ~4 MiB per x tile (Pallas double-buffers it); keep tile_l a multiple
        # of 128 for lane-dense score / mask tiles; cap at 2048.
        tl = (x_tile_budget_bytes // (tile_b * H * x_bytes)) // 128 * 128
        tile_l = int(max(128, min(tl, 2048)))
    tile_l = min(tile_l, pl.cdiv(L, 128) * 128)
    tile_l = max(128, (tile_l // 128) * 128)

    Bp = pl.cdiv(B, tile_b) * tile_b
    Lp = pl.cdiv(L, tile_l) * tile_l

    # --- pad & pack inputs (padded positions masked with -inf) ----------------
    mb = jnp.where(x_mask, -jnp.inf, 0.0).astype(jnp.bfloat16)   # (B, L)
    if Bp != B or Lp != L:
        x_in = jnp.pad(x, ((0, Bp - B), (0, Lp - L), (0, 0)))
        mb = jnp.pad(mb, ((0, Bp - B), (0, Lp - L)), constant_values=-jnp.inf)
        wy = jnp.pad(wy, ((0, Bp - B), (0, 0)))
    else:
        x_in = x
    mb = mb.reshape(Bp, 1, Lp)
    wy = wy.reshape(Bp, 1, H)

    grid = (Bp // tile_b, Lp // tile_l)

    out = pl.pallas_call(
        _bilinear_seq_attn_kernel,
        out_shape=jax.ShapeDtypeStruct((Bp, 1, 1), jnp.float32),
        grid_spec=pltpu.PrefetchScalarGridSpec(
            num_scalar_prefetch=0,
            grid=grid,
            in_specs=[
                pl.BlockSpec((tile_b, 1, H), lambda b, l: (b, 0, 0)),        # Wy (resident per batch tile)
                pl.BlockSpec((tile_b, tile_l, H), lambda b, l: (b, l, 0)),   # x  (streamed)
                pl.BlockSpec((tile_b, 1, tile_l), lambda b, l: (b, 0, l)),   # mask bias (streamed)
            ],
            out_specs=pl.BlockSpec((tile_b, 1, 1), lambda b, l: (b, 0, 0)),
        ),
        compiler_params=pltpu.CompilerParams(
            dimension_semantics=("parallel", "arbitrary"),
            vmem_limit_bytes=32 * 1024 * 1024,
        ),
        cost_estimate=pl.CostEstimate(
            flops=2 * Bp * Lp * H,
            transcendentals=0,
            bytes_accessed=int(
                x_bytes * Bp * Lp * H + 2 * Bp * Lp + 4 * Bp * H + 4 * Bp
            ),
        ),
    )(wy, x_in, mb)

    return out[:B, 0, 0]


if __name__ == "__main__":
    key = jax.random.PRNGKey(0)

    def ref_fn(x, y, x_mask, weight, bias):
        # Pure-JAX reference mirroring the PyTorch forward (and the kernel's
        # cast of Wy to x.dtype on the bf16 path).
        Wy = (
            jnp.dot(y.astype(jnp.float32), weight.astype(jnp.float32).T,
                    precision=lax.Precision.HIGHEST)
            + bias.astype(jnp.float32)[None, :]
        )
        Wy = Wy.astype(x.dtype).astype(jnp.float32)
        xWy = jnp.sum(x.astype(jnp.float32) * Wy[:, None, :], axis=-1)
        xWy = jnp.where(x_mask, -jnp.inf, xWy)
        return jnp.max(xWy, axis=1)

    def run_case(B, L, H, Hy, x_dtype=jnp.float32, tile_l=None,
                 rtol=2e-3, atol=2e-3):
        ks = jax.random.split(jax.random.fold_in(key, B * 1000 + L), 5)
        x = jax.random.normal(ks[0], (B, L, H), dtype=jnp.float32).astype(x_dtype)
        y = jax.random.normal(ks[1], (B, Hy), dtype=jnp.float32)
        weight = jax.random.normal(ks[2], (H, Hy), dtype=jnp.float32) * 0.1
        bias = jax.random.normal(ks[3], (H,), dtype=jnp.float32) * 0.1
        x_mask = jax.random.bernoulli(ks[4], 0.3, (B, L))
        x_mask = x_mask.at[:, 0].set(False)   # keep >=1 unmasked position per row

        out = bilinear_seq_attn(x, y, x_mask, weight, bias, tile_l=tile_l)
        out = jax.block_until_ready(out)
        ref = ref_fn(x, y, x_mask, weight, bias)
        np.testing.assert_allclose(np.asarray(out), np.asarray(ref),
                                   rtol=rtol, atol=atol)

    # f32, multi seq-tile running-max accumulation (3 L-tiles, 1 batch tile).
    run_case(B=4, L=384, H=64, Hy=48, tile_l=128)
    # bf16 x + padding path: B=10 -> Bp=16 (2 parallel batch tiles), L=200 -> 256.
    run_case(B=10, L=200, H=32, Hy=24, x_dtype=jnp.bfloat16, tile_l=128,
             rtol=2e-2, atol=2e-2)
    # Default tile sizing path (tile_l derived from the ~4 MiB budget).
    run_case(B=4, L=384, H=64, Hy=48)

    print("KERNEL_OK")
</pallas_src>

<mosaic_0001>
module attributes {stable_mosaic.version = 11 : i64} {
  func.func @_bilinear_seq_attn_kernel(%arg0: i32, %arg1: i32, %arg2: memref<4x1x64xf32, #tpu.memory_space<vmem>>, %arg3: memref<4x128x64xf32, #tpu.memory_space<vmem>>, %arg4: memref<4x1x128xbf16, #tpu.memory_space<vmem>>, %arg5: memref<4x1x1xf32, #tpu.memory_space<vmem>>) attributes {dimension_semantics = [#tpu.dimension_semantics<parallel>, #tpu.dimension_semantics<arbitrary>], iteration_bounds = array<i64: 1, 3>, scalar_prefetch = 0 : i64, scratch_operands = 0 : i64, tpu.core_type = #tpu.core_type<tc>, window_params = [{transform_indices = @transform_0, window_bounds = array<i64: 4, 1, 64>}, {transform_indices = @transform_1, window_bounds = array<i64: 4, 128, 64>}, {transform_indices = @transform_2, window_bounds = array<i64: 4, 1, 128>}, {transform_indices = @transform_3, window_bounds = array<i64: 4, 1, 1>}]} {
    %c0_i32 = arith.constant 0 : i32
    %0 = arith.cmpi eq, %arg1, %c0_i32 : i32
    %1 = arith.extui %0 : i1 to i32
    %c0_i32_0 = arith.constant 0 : i32
    %2 = arith.cmpi ne, %1, %c0_i32_0 : i32
    scf.if %2 {
      %cst_16 = arith.constant 0xFF800000 : f32
      %14 = vector.broadcast %cst_16 : f32 to vector<4x1x1xf32>
      %c0_17 = arith.constant 0 : index
      %c0_18 = arith.constant 0 : index
      %c0_19 = arith.constant 0 : index
      %15 = vector.load %arg5[%c0_17, %c0_18, %c0_19] : memref<4x1x1xf32, #tpu.memory_space<vmem>>, vector<4x1x1xf32>
      tpu.vector_store %arg5[%c0_17, %c0_18, %c0_19], %14 {strides = array<i32>} : memref<4x1x1xf32, #tpu.memory_space<vmem>>, vector<4x1x1xf32>,
    } else {
    }
    %c0 = arith.constant 0 : index
    %c0_1 = arith.constant 0 : index
    %c0_2 = arith.constant 0 : index
    %3 = vector.load %arg3[%c0, %c0_1, %c0_2] : memref<4x128x64xf32, #tpu.memory_space<vmem>>, vector<4x128x64xf32>
    %c0_3 = arith.constant 0 : index
    %c0_4 = arith.constant 0 : index
    %c0_5 = arith.constant 0 : index
    %4 = vector.load %arg2[%c0_3, %c0_4, %c0_5] : memref<4x1x64xf32, #tpu.memory_space<vmem>>, vector<4x1x64xf32>
    "tpu.trace_start"() <{level = 10 : i32, message = "bqh,blh->bql"}> : () -> ()
    %cst = arith.constant dense<0.000000e+00> : vector<4x1x128xf32>
    %5 = tpu.matmul %4, %3, %cst {dimension_numbers = #tpu.dot_dimension_numbers<[2], [2], [1], [1], [0, 0, 0, 1, 1, 1], [0], [0]>} : vector<4x1x64xf32>, vector<4x128x64xf32>, vector<4x1x128xf32> -> vector<4x1x128xf32>
    "tpu.trace_stop"() : () -> ()
    %c0_6 = arith.constant 0 : index
    %c0_7 = arith.constant 0 : index
    %c0_8 = arith.constant 0 : index
    %6 = vector.load %arg4[%c0_6, %c0_7, %c0_8] : memref<4x1x128xbf16, #tpu.memory_space<vmem>>, vector<4x1x128xbf16>
    %7 = arith.extf %6 : vector<4x1x128xbf16> to vector<4x1x128xf32>
    %8 = arith.addf %5, %7 : vector<4x1x128xf32>
    %c0_9 = arith.constant 0 : index
    %c0_10 = arith.constant 0 : index
    %c0_11 = arith.constant 0 : index
    %9 = vector.load %arg5[%c0_9, %c0_10, %c0_11] : memref<4x1x1xf32, #tpu.memory_space<vmem>>, vector<4x1x1xf32>
    %cst_12 = arith.constant dense<0xFF800000> : vector<4x1xf32>
    %10 = vector.multi_reduction <maximumf>, %8, %cst_12 [2] : vector<4x1x128xf32> to vector<4x1xf32>
    %11 = vector.shape_cast %10 : vector<4x1xf32> to vector<4x1x1xf32>
    %12 = arith.maximumf %9, %11 : vector<4x1x1xf32>
    %c0_13 = arith.constant 0 : index
    %c0_14 = arith.constant 0 : index
    %c0_15 = arith.constant 0 : index
    %13 = vector.load %arg5[%c0_13, %c0_14, %c0_15] : memref<4x1x1xf32, #tpu.memory_space<vmem>>, vector<4x1x1xf32>
    tpu.vector_store %arg5[%c0_13, %c0_14, %c0_15], %12 {strides = array<i32>} : memref<4x1x1xf32, #tpu.memory_space<vmem>>, vector<4x1x1xf32>,
    return
  }
  func.func @transform_0(%arg0: i32, %arg1: i32) -> (i32, i32, i32) {
    %c0_i32 = arith.constant 0 : i32
    %c0_i32_0 = arith.constant 0 : i32
    %c0_i32_1 = arith.constant 0 : i32
    return %arg0, %c0_i32, %c0_i32_0 : i32, i32, i32
  }
  func.func @transform_1(%arg0: i32, %arg1: i32) -> (i32, i32, i32) {
    %c0_i32 = arith.constant 0 : i32
    %c0_i32_0 = arith.constant 0 : i32
    return %arg0, %arg1, %c0_i32 : i32, i32, i32
  }
  func.func @transform_2(%arg0: i32, %arg1: i32) -> (i32, i32, i32) {
    %c0_i32 = arith.constant 0 : i32
    %c0_i32_0 = arith.constant 0 : i32
    return %arg0, %c0_i32, %arg1 : i32, i32, i32
  }
  func.func @transform_3(%arg0: i32, %arg1: i32) -> (i32, i32, i32) {
    %c0_i32 = arith.constant 0 : i32
    %c0_i32_0 = arith.constant 0 : i32
    %c0_i32_1 = arith.constant 0 : i32
    return %arg0, %c0_i32, %c0_i32_0 : i32, i32, i32
  }
}

</mosaic_0001>

<llo_original>
// kernel: tpu_custom_call.1
$region0: #{tpu_custom_call.1}
  #allocation0 [shape = 'u32[]', space=smem, size = 0x4, offset = 0x4, fixed_abs, tag = 'smem constant byte address 0x4 - core index']
  #allocation1 [shape = 'u32[144,128]{1,0:T(1,128)}', space=vmem, size = 0x12000, scoped, tag = 'internal scratch']
  %s0 = inlined_call_operand.vmem [shape: f32[4,1,64], index: 0, kind: input, shape index: {}]
  %s1 = inlined_call_operand.vmem [shape: f32[4,384,64], index: 1, kind: input, shape index: {}]
  %s2 = inlined_call_operand.vmem [shape: bf16[4,1,384], index: 2, kind: input, shape index: {}]
  %s3 = inlined_call_operand.vmem [shape: f32[4,1,1], index: 3, kind: output, shape index: {}]
  %s4 = sld [smem:[#allocation0]]
  $region121: #{tpu_custom_call.1} parent=0
    _
  %s6 = ssub.s32 1, %s4
  %s7 = scalar_select 0, %s6, %s4
  $region1: #{tpu_custom_call.1} parent=0
    #allocation2 [shape = 'u8[524288]{0}', space=vmem, size = 0x80000, scoped, tag = 'input window, operand 1']
    #allocation3 [shape = 'u8[4096]{0}', space=vmem, size = 0x1000, scoped, tag = 'input window, operand 2']
    loop: start=0, step=1, limit=5
    $region2: #{tpu_custom_call.1} parent=1 // loop_pre_header
      _
    $region3: #{tpu_custom_call.1} parent=1 // loop_header
      %s9 = sphi 0, %s13
      %p10 = scmp.ge.s32.totalorder %s9, 5
      %s16 = sphi 0, %s28
      %s17 = sphi 0, %s24
      %s18 = sphi 0, %s16
      %s19 = sphi 0, %s17
      %s20 = sphi 0, %s18
      %s21 = sphi 0, %s19
      %s31 = sphi 0, %s33
      %s34 = sphi 0, %s31
      %s35 = sphi 0, %s34
      %s51 = sphi 0, %s35
      %s59 = sphi 0, %s61
      %s62 = sphi 0, %s59
      %s63 = sphi 0, %s62
      %s79 = sphi 0, %s63
      %s87 = sphi 0, %s89
      %s90 = sphi 0, %s87
      %s91 = sphi 0, %s90
      %s107 = sphi 0, %s91
      %s113 = sphi 0, %s115
      %s116 = sphi 0, %s113
      %s117 = sphi 0, %s116
      %s133 = sphi 0, %s117
    $region4: #{tpu_custom_call.1} parent=1 // loop_header_branch
      %12 = sbr.rel (%p10) target = $region8
    $region5: #{tpu_custom_call.1} parent=1 // loop_body
      %s14 = ssub.s32 %s9, 1
      %s15 = ssub.s32 %s9, 2
      %s22 = sadd.s32 1, %s17
      %p23 = scmp.ge.s32.totalorder %s22, 3
      %s24 = scalar_select %p23, 0, %s22
      %s25 = sadd.s32 1, %s16
      %s26 = scalar_select %p23, %s25, %s16
      %p27 = scmp.ge.s32.totalorder %s26, 1
      %s28 = scalar_select %p27, 0, %s26
      %s29 = ssub.s32 %s16, %s28
      %p30 = scmp.eq.s32.totalorder %s29, 0
      %s32 = sadd.s32 %s31, 1
      %s33 = scalar_select %p30, %s31, %s32
      %p36 = pneg %p30
      %p37 = scmp.eq.s32.totalorder %s9, 2
      %p38 = por %p36, %p37
      %p39 = scmp.ne.s32.totalorder %s31, %s34
      %p40 = scmp.eq.s32.totalorder %s9, 0
      %p41 = por %p39, %p40
      %p42 = scmp.ne.s32.totalorder %s31, %s34
      %p43 = scmp.eq.s32.totalorder %s14, 2
      %p44 = por %p42, %p43
      %p45 = scmp.ne.s32.totalorder %s34, %s35
      %p46 = scmp.eq.s32.totalorder %s14, 0
      %p47 = por %p45, %p46
      %p48 = scmp.ne.s32.totalorder %s34, %s35
      %p49 = scmp.eq.s32.totalorder %s15, 2
      %p50 = por %p48, %p49
      %p52 = scmp.ne.s32.totalorder %s35, %s51
      %p53 = scmp.eq.s32.totalorder %s15, 0
      %p54 = por %p52, %p53
      %s55 = ssub.s32 %s16, %s28
      %s56 = ssub.s32 %s17, %s24
      %s57 = sor.u32 %s55, %s56
      %p58 = scmp.eq.s32.totalorder %s57, 0
      %s60 = sadd.s32 %s59, 1
      %s61 = scalar_select %p58, %s59, %s60
      %p64 = pneg %p58
      %p65 = scmp.eq.s32.totalorder %s9, 2
      %p66 = por %p64, %p65
      %p67 = scmp.ne.s32.totalorder %s59, %s62
      %p68 = scmp.eq.s32.totalorder %s9, 0
      %p69 = por %p67, %p68
      %p70 = scmp.ne.s32.totalorder %s59, %s62
      %p71 = scmp.eq.s32.totalorder %s14, 2
      %p72 = por %p70, %p71
      %p73 = scmp.ne.s32.totalorder %s62, %s63
      %p74 = scmp.eq.s32.totalorder %s14, 0
      %p75 = por %p73, %p74
      %p76 = scmp.ne.s32.totalorder %s62, %s63
      %p77 = scmp.eq.s32.totalorder %s15, 2
      %p78 = por %p76, %p77
      %p80 = scmp.ne.s32.totalorder %s63, %s79
      %p81 = scmp.eq.s32.totalorder %s15, 0
      %p82 = por %p80, %p81
      %s83 = ssub.s32 %s16, %s28
      %s84 = ssub.s32 %s17, %s24
      %s85 = sor.u32 %s83, %s84
      %p86 = scmp.eq.s32.totalorder %s85, 0
      %s88 = sadd.s32 %s87, 1
      %s89 = scalar_select %p86, %s87, %s88
      %p92 = pneg %p86
      %p93 = scmp.eq.s32.totalorder %s9, 2
      %p94 = por %p92, %p93
      %p95 = scmp.ne.s32.totalorder %s87, %s90
      %p96 = scmp.eq.s32.totalorder %s9, 0
      %p97 = por %p95, %p96
      %p98 = scmp.ne.s32.totalorder %s87, %s90
      %p99 = scmp.eq.s32.totalorder %s14, 2
      %p100 = por %p98, %p99
      %p101 = scmp.ne.s32.totalorder %s90, %s91
      %p102 = scmp.eq.s32.totalorder %s14, 0
      %p103 = por %p101, %p102
      %p104 = scmp.ne.s32.totalorder %s90, %s91
      %p105 = scmp.eq.s32.totalorder %s15, 2
      %p106 = por %p104, %p105
      %p108 = scmp.ne.s32.totalorder %s91, %s107
      %p109 = scmp.eq.s32.totalorder %s15, 0
      %p110 = por %p108, %p109
      %s111 = ssub.s32 %s16, %s28
      %p112 = scmp.eq.s32.totalorder %s111, 0
      %s114 = sadd.s32 %s113, 1
      %s115 = scalar_select %p112, %s113, %s114
      %p118 = pneg %p112
      %p119 = scmp.eq.s32.totalorder %s9, 2
      %p120 = por %p118, %p119
      %p121 = scmp.ne.s32.totalorder %s113, %s116
      %p122 = scmp.eq.s32.totalorder %s9, 0
      %p123 = por %p121, %p122
      %p124 = scmp.ne.s32.totalorder %s113, %s116
      %p125 = scmp.eq.s32.totalorder %s14, 2
      %p126 = por %p124, %p125
      %p127 = scmp.ne.s32.totalorder %s116, %s117
      %p128 = scmp.eq.s32.totalorder %s14, 0
      %p129 = por %p127, %p128
      %p130 = scmp.ne.s32.totalorder %s116, %s117
      %p131 = scmp.eq.s32.totalorder %s15, 2
      %p132 = por %p130, %p131
      %p134 = scmp.ne.s32.totalorder %s117, %s133
      %p135 = scmp.eq.s32.totalorder %s15, 0
      %p136 = por %p134, %p135
      %p137 = scmp.le.s32.totalorder 1, %s9
      %p138 = scmp.lt.s32.totalorder %s9, 4
      %p139 = pnand %p137, %p138
      %p140 = pneg %p139
      // Predicated region
      $region9: #{tpu_custom_call.1} parent=5 // pred_check
        _
      $region10: #{tpu_custom_call.1} parent=5 // pred_check_branch
        %142 = sbr.rel (%p139) target = $region12
      $region11: #{tpu_custom_call.1} parent=5 // pred_region
        %s143 = ssub.s32 %s9, 1
        // Predicated region
        $region13: #{tpu_custom_call.1} parent=11 // pred_check
          %p144 = pneg %p47
        $region14: #{tpu_custom_call.1} parent=11 // pred_check_branch
          %146 = sbr.rel (%p144) target = $region16
        $region15: #{tpu_custom_call.1} parent=11 // pred_region
          %s147 = smul.u32 4, %s18
          %p148 = scmp.lt.s32.totalorder %s147, 3
          %s149 = scalar_select %p148, %s147, 3
          %s150 = scalar_lea.vmem %s0, %s149
          %s151 = smul.u32 4, %s18
        $region16: #{tpu_custom_call.1} parent=11 // pred_fallthru
          _
      $region12: #{tpu_custom_call.1} parent=5 // pred_fallthru
        _
      %p152 = scmp.lt.s32.totalorder %s9, 3
      // Predicated region
      $region17: #{tpu_custom_call.1} parent=5 // pred_check
        %p153 = pneg %p152
      $region18: #{tpu_custom_call.1} parent=5 // pred_check_branch
        %155 = sbr.rel (%p153) target = $region20
      $region19: #{tpu_custom_call.1} parent=5 // pred_region
        // Predicated region
        $region21: #{tpu_custom_call.1} parent=19 // pred_check
          %p156 = pneg %p69
        $region22: #{tpu_custom_call.1} parent=19 // pred_check_branch
          %158 = sbr.rel (%p156) target = $region24
        $region23: #{tpu_custom_call.1} parent=19 // pred_region
          %s159 = sand.u32 %s59, 1
          %s160 = sand.u32 %s59, 1
          %s161 = smul.addr %s160, 512
          %s162 = scalar_lea.vmem [#allocation2], %s161
          %s163 = smul.u32 4, %s16
          %s164 = smul.u32 16, %s17
          %s165 = smul.addr %s163, 48
          %s166 = sadd.s32 %s164, %s165
          %s167 = smul.addr %s166, 8
          %s168 = scalar_lea.vmem %s1, %s167
          // Predicated region
          $region25: #{tpu_custom_call.1} parent=23 // pred_check
            _
          $region26: #{tpu_custom_call.1} parent=23 // pred_check_branch
            %170 = sbr.rel (0) target = $region28
          $region27: #{tpu_custom_call.1} parent=23 // pred_region
            // Predicated region
            $region29: #{tpu_custom_call.1} parent=27 // pred_check
              _
            $region30: #{tpu_custom_call.1} parent=27 // pred_check_branch
              %172 = sbr.rel (0) target = $region32
            $region31: #{tpu_custom_call.1} parent=27 // pred_region
              // Predicated region
              $region44: #{tpu_custom_call.1} parent=31 // pred_check
                _
              $region45: #{tpu_custom_call.1} parent=31 // pred_check_branch
                %314 = sbr.rel (0) target = $region47
              $region46: #{tpu_custom_call.1} parent=31 // pred_region
                loop: start=0, step=1, limit=1
                $region48: #{tpu_custom_call.1} parent=46 // loop_pre_header
                  _
                $region49: #{tpu_custom_call.1} parent=46 // loop_header
                  %s316 = sphi 0, %s320
                  %p317 = scmp.ge.s32.totalorder %s316, 1
                  %s321 = sphi %s168, %s168
                  %s322 = sphi %s162, %s162
                $region50: #{tpu_custom_call.1} parent=46 // loop_header_branch
                  %319 = sbr.rel (%p317) target = $region54
                $region51: #{tpu_custom_call.1} parent=46 // loop_body
                  %v323 = vld [vmem:[%s321] sm:$0xff]
                  %324 = vst [vmem:[%s322] sm:$0xff] %v323
                  %v325 = vld [vmem:[%s321 + $0x8] sm:$0xff]
                  %326 = vst [vmem:[%s322 + $0x8] sm:$0xff] %v325
                  %v327 = vld [vmem:[%s321 + $0x10] sm:$0xff]
                  %328 = vst [vmem:[%s322 + $0x10] sm:$0xff] %v327
                  %v329 = vld [vmem:[%s321 + $0x18] sm:$0xff]
                  %330 = vst [vmem:[%s322 + $0x18] sm:$0xff] %v329
                  %v331 = vld [vmem:[%s321 + $0x20] sm:$0xff]
                  %332 = vst [vmem:[%s322 + $0x20] sm:$0xff] %v331
                  %v333 = vld [vmem:[%s321 + $0x28] sm:$0xff]
                  %334 = vst [vmem:[%s322 + $0x28] sm:$0xff] %v333
                  %v335 = vld [vmem:[%s321 + $0x30] sm:$0xff]
                  %336 = vst [vmem:[%s322 + $0x30] sm:$0xff] %v335
                  %v337 = vld [vmem:[%s321 + $0x38] sm:$0xff]
                  %338 = vst [vmem:[%s322 + $0x38] sm:$0xff] %v337
                  %v339 = vld [vmem:[%s321 + $0x40] sm:$0xff]
                  %340 = vst [vmem:[%s322 + $0x40] sm:$0xff] %v339
                  %v341 = vld [vmem:[%s321 + $0x48] sm:$0xff]
                  %342 = vst [vmem:[%s322 + $0x48] sm:$0xff] %v341
                  %v343 = vld [vmem:[%s321 + $0x50] sm:$0xff]
                  %344 = vst [vmem:[%s322 + $0x50] sm:$0xff] %v343
                  %v345 = vld [vmem:[%s321 + $0x58] sm:$0xff]
                  %346 = vst [vmem:[%s322 + $0x58] sm:$0xff] %v345
                  %v347 = vld [vmem:[%s321 + $0x60] sm:$0xff]
                  %348 = vst [vmem:[%s322 + $0x60] sm:$0xff] %v347
                  %v349 = vld [vmem:[%s321 + $0x68] sm:$0xff]
                  %350 = vst [vmem:[%s322 + $0x68] sm:$0xff] %v349
                  %v351 = vld [vmem:[%s321 + $0x70] sm:$0xff]
                  %352 = vst [vmem:[%s322 + $0x70] sm:$0xff] %v351
                  %v353 = vld [vmem:[%s321 + $0x78] sm:$0xff]
                  %354 = vst [vmem:[%s322 + $0x78] sm:$0xff] %v353
                  %v355 = vld [vmem:[%s321 + $0x180] sm:$0xff]
                  %356 = vst [vmem:[%s322 + $0x80] sm:$0xff] %v355
                  %v357 = vld [vmem:[%s321 + $0x188] sm:$0xff]
                  %358 = vst [vmem:[%s322 + $0x88] sm:$0xff] %v357
                  %v359 = vld [vmem:[%s321 + $0x190] sm:$0xff]
                  %360 = vst [vmem:[%s322 + $0x90] sm:$0xff] %v359
                  %v361 = vld [vmem:[%s321 + $0x198] sm:$0xff]
                  %362 = vst [vmem:[%s322 + $0x98] sm:$0xff] %v361
                  %v363 = vld [vmem:[%s321 + $0x1a0] sm:$0xff]
                  %364 = vst [vmem:[%s322 + $0xa0] sm:$0xff] %v363
                  %v365 = vld [vmem:[%s321 + $0x1a8] sm:$0xff]
                  %366 = vst [vmem:[%s322 + $0xa8] sm:$0xff] %v365
                  %v367 = vld [vmem:[%s321 + $0x1b0] sm:$0xff]
                  %368 = vst [vmem:[%s322 + $0xb0] sm:$0xff] %v367
                  %v369 = vld [vmem:[%s321 + $0x1b8] sm:$0xff]
                  %370 = vst [vmem:[%s322 + $0xb8] sm:$0xff] %v369
                  %v371 = vld [vmem:[%s321 + $0x1c0] sm:$0xff]
                  %372 = vst [vmem:[%s322 + $0xc0] sm:$0xff] %v371
                  %v373 = vld [vmem:[%s321 + $0x1c8] sm:$0xff]
                  %374 = vst [vmem:[%s322 + $0xc8] sm:$0xff] %v373
                  %v375 = vld [vmem:[%s321 + $0x1d0] sm:$0xff]
                  %376 = vst [vmem:[%s322 + $0xd0] sm:$0xff] %v375
                  %v377 = vld [vmem:[%s321 + $0x1d8] sm:$0xff]
                  %378 = vst [vmem:[%s322 + $0xd8] sm:$0xff] %v377
                  %v379 = vld [vmem:[%s321 + $0x1e0] sm:$0xff]
                  %380 = vst [vmem:[%s322 + $0xe0] sm:$0xff] %v379
                  %v381 = vld [vmem:[%s321 + $0x1e8] sm:$0xff]
                  %382 = vst [vmem:[%s322 + $0xe8] sm:$0xff] %v381
                  %v383 = vld [vmem:[%s321 + $0x1f0] sm:$0xff]
                  %384 = vst [vmem:[%s322 + $0xf0] sm:$0xff] %v383
                  %v385 = vld [vmem:[%s321 + $0x1f8] sm:$0xff]
                  %386 = vst [vmem:[%s322 + $0xf8] sm:$0xff] %v385
                  %v387 = vld [vmem:[%s321 + $0x300] sm:$0xff]
                  %388 = vst [vmem:[%s322 + $0x100] sm:$0xff] %v387
                  %v389 = vld [vmem:[%s321 + $0x308] sm:$0xff]
                  %390 = vst [vmem:[%s322 + $0x108] sm:$0xff] %v389
                  %v391 = vld [vmem:[%s321 + $0x310] sm:$0xff]
                  %392 = vst [vmem:[%s322 + $0x110] sm:$0xff] %v391
                  %v393 = vld [vmem:[%s321 + $0x318] sm:$0xff]
                  %394 = vst [vmem:[%s322 + $0x118] sm:$0xff] %v393
                  %v395 = vld [vmem:[%s321 + $0x320] sm:$0xff]
                  %396 = vst [vmem:[%s322 + $0x120] sm:$0xff] %v395
                  %v397 = vld [vmem:[%s321 + $0x328] sm:$0xff]
                  %398 = vst [vmem:[%s322 + $0x128] sm:$0xff] %v397
                  %v399 = vld [vmem:[%s321 + $0x330] sm:$0xff]
                  %400 = vst [vmem:[%s322 + $0x130] sm:$0xff] %v399
                  %v401 = vld [vmem:[%s321 + $0x338] sm:$0xff]
                  %402 = vst [vmem:[%s322 + $0x138] sm:$0xff] %v401
                  %v403 = vld [vmem:[%s321 + $0x340] sm:$0xff]
                  %404 = vst [vmem:[%s322 + $0x140] sm:$0xff] %v403
                  %v405 = vld [vmem:[%s321 + $0x348] sm:$0xff]
                  %406 = vst [vmem:[%s322 + $0x148] sm:$0xff] %v405
                  %v407 = vld [vmem:[%s321 + $0x350] sm:$0xff]
                  %408 = vst [vmem:[%s322 + $0x150] sm:$0xff] %v407
                  %v409 = vld [vmem:[%s321 + $0x358] sm:$0xff]
                  %410 = vst [vmem:[%s322 + $0x158] sm:$0xff] %v409
                  %v411 = vld [vmem:[%s321 + $0x360] sm:$0xff]
                  %412 = vst [vmem:[%s322 + $0x160] sm:$0xff] %v411
                  %v413 = vld [vmem:[%s321 + $0x368] sm:$0xff]
                  %414 = vst [vmem:[%s322 + $0x168] sm:$0xff] %v413
                  %v415 = vld [vmem:[%s321 + $0x370] sm:$0xff]
                  %416 = vst [vmem:[%s322 + $0x170] sm:$0xff] %v415
                  %v417 = vld [vmem:[%s321 + $0x378] sm:$0xff]
                  %418 = vst [vmem:[%s322 + $0x178] sm:$0xff] %v417
                  %v419 = vld [vmem:[%s321 + $0x480] sm:$0xff]
                  %420 = vst [vmem:[%s322 + $0x180] sm:$0xff] %v419
                  %v421 = vld [vmem:[%s321 + $0x488] sm:$0xff]
                  %422 = vst [vmem:[%s322 + $0x188] sm:$0xff] %v421
                  %v423 = vld [vmem:[%s321 + $0x490] sm:$0xff]
                  %424 = vst [vmem:[%s322 + $0x190] sm:$0xff] %v423
                  %v425 = vld [vmem:[%s321 + $0x498] sm:$0xff]
                  %426 = vst [vmem:[%s322 + $0x198] sm:$0xff] %v425
                  %v427 = vld [vmem:[%s321 + $0x4a0] sm:$0xff]
                  %428 = vst [vmem:[%s322 + $0x1a0] sm:$0xff] %v427
                  %v429 = vld [vmem:[%s321 + $0x4a8] sm:$0xff]
                  %430 = vst [vmem:[%s322 + $0x1a8] sm:$0xff] %v429
                  %v431 = vld [vmem:[%s321 + $0x4b0] sm:$0xff]
                  %432 = vst [vmem:[%s322 + $0x1b0] sm:$0xff] %v431
                  %v433 = vld [vmem:[%s321 + $0x4b8] sm:$0xff]
                  %434 = vst [vmem:[%s322 + $0x1b8] sm:$0xff] %v433
                  %v435 = vld [vmem:[%s321 + $0x4c0] sm:$0xff]
                  %436 = vst [vmem:[%s322 + $0x1c0] sm:$0xff] %v435
                  %v437 = vld [vmem:[%s321 + $0x4c8] sm:$0xff]
                  %438 = vst [vmem:[%s322 + $0x1c8] sm:$0xff] %v437
                  %v439 = vld [vmem:[%s321 + $0x4d0] sm:$0xff]
                  %440 = vst [vmem:[%s322 + $0x1d0] sm:$0xff] %v439
                  %v441 = vld [vmem:[%s321 + $0x4d8] sm:$0xff]
                  %442 = vst [vmem:[%s322 + $0x1d8] sm:$0xff] %v441
                  %v443 = vld [vmem:[%s321 + $0x4e0] sm:$0xff]
                  %444 = vst [vmem:[%s322 + $0x1e0] sm:$0xff] %v443
                  %v445 = vld [vmem:[%s321 + $0x4e8] sm:$0xff]
                  %446 = vst [vmem:[%s322 + $0x1e8] sm:$0xff] %v445
                  %v447 = vld [vmem:[%s321 + $0x4f0] sm:$0xff]
                  %448 = vst [vmem:[%s322 + $0x1f0] sm:$0xff] %v447
                  %v449 = vld [vmem:[%s321 + $0x4f8] sm:$0xff]
                  %450 = vst [vmem:[%s322 + $0x1f8] sm:$0xff] %v449
                $region52: #{tpu_custom_call.1} parent=46 // loop_footer
                  %s320 = sadd.s32 1, %s316
                $region53: #{tpu_custom_call.1} parent=46 // loop_footer_branch
                  %315 = sbr.rel target = $region49
                $region54: #{tpu_custom_call.1} parent=46 // loop_exit
                  _
              $region47: #{tpu_custom_call.1} parent=31 // pred_fallthru
                _
              // Predicated region
              $region55: #{tpu_custom_call.1} parent=31 // pred_check
                _
              $region56: #{tpu_custom_call.1} parent=31 // pred_check_branch
                %452 = sbr.rel target = $region58
              $region57: #{tpu_custom_call.1} parent=31 // pred_region
                _
              $region58: #{tpu_custom_call.1} parent=31 // pred_fallthru
                _
            $region32: #{tpu_custom_call.1} parent=27 // pred_fallthru
              _
            // Predicated region
            $region33: #{tpu_custom_call.1} parent=27 // pred_check
              _
            $region34: #{tpu_custom_call.1} parent=27 // pred_check_branch
              %174 = sbr.rel target = $region36
            $region35: #{tpu_custom_call.1} parent=27 // pred_region
              %s176 = ssub.s32 256, 1
              loop: start=0, step=1, limit=1
              $region37: #{tpu_custom_call.1} parent=35 // loop_pre_header
                _
              $region38: #{tpu_custom_call.1} parent=35 // loop_header
                %s178 = sphi 0, %s182
                %p179 = scmp.ge.s32.totalorder %s178, 1
                %s183 = sphi %s168, %s168
                %s184 = sphi %s162, %s162
              $region39: #{tpu_custom_call.1} parent=35 // loop_header_branch
                %181 = sbr.rel (%p179) target = $region43
              $region40: #{tpu_custom_call.1} parent=35 // loop_body
                %v185 = vld [vmem:[%s183] sm:%s176]
                %186 = vst [vmem:[%s184] sm:%s176] %v185
                %v187 = vld [vmem:[%s183 + $0x8] sm:%s176]
                %188 = vst [vmem:[%s184 + $0x8] sm:%s176] %v187
                %v189 = vld [vmem:[%s183 + $0x10] sm:%s176]
                %190 = vst [vmem:[%s184 + $0x10] sm:%s176] %v189
                %v191 = vld [vmem:[%s183 + $0x18] sm:%s176]
                %192 = vst [vmem:[%s184 + $0x18] sm:%s176] %v191
                %v193 = vld [vmem:[%s183 + $0x20] sm:%s176]
                %194 = vst [vmem:[%s184 + $0x20] sm:%s176] %v193
                %v195 = vld [vmem:[%s183 + $0x28] sm:%s176]
                %196 = vst [vmem:[%s184 + $0x28] sm:%s176] %v195
                %v197 = vld [vmem:[%s183 + $0x30] sm:%s176]
                %198 = vst [vmem:[%s184 + $0x30] sm:%s176] %v197
                %v199 = vld [vmem:[%s183 + $0x38] sm:%s176]
                %200 = vst [vmem:[%s184 + $0x38] sm:%s176] %v199
                %v201 = vld [vmem:[%s183 + $0x40] sm:%s176]
                %202 = vst [vmem:[%s184 + $0x40] sm:%s176] %v201
                %v203 = vld [vmem:[%s183 + $0x48] sm:%s176]
                %204 = vst [vmem:[%s184 + $0x48] sm:%s176] %v203
                %v205 = vld [vmem:[%s183 + $0x50] sm:%s176]
                %206 = vst [vmem:[%s184 + $0x50] sm:%s176] %v205
                %v207 = vld [vmem:[%s183 + $0x58] sm:%s176]
                %208 = vst [vmem:[%s184 + $0x58] sm:%s176] %v207
                %v209 = vld [vmem:[%s183 + $0x60] sm:%s176]
                %210 = vst [vmem:[%s184 + $0x60] sm:%s176] %v209
                %v211 = vld [vmem:[%s183 + $0x68] sm:%s176]
                %212 = vst [vmem:[%s184 + $0x68] sm:%s176] %v211
                %v213 = vld [vmem:[%s183 + $0x70] sm:%s176]
                %214 = vst [vmem:[%s184 + $0x70] sm:%s176] %v213
                %v215 = vld [vmem:[%s183 + $0x78] sm:%s176]
                %216 = vst [vmem:[%s184 + $0x78] sm:%s176] %v215
                %v217 = vld [vmem:[%s183 + $0x180] sm:%s176]
                %218 = vst [vmem:[%s184 + $0x80] sm:%s176] %v217
                %v219 = vld [vmem:[%s183 + $0x188] sm:%s176]
                %220 = vst [vmem:[%s184 + $0x88] sm:%s176] %v219
                %v221 = vld [vmem:[%s183 + $0x190] sm:%s176]
                %222 = vst [vmem:[%s184 + $0x90] sm:%s176] %v221
                %v223 = vld [vmem:[%s183 + $0x198] sm:%s176]
                %224 = vst [vmem:[%s184 + $0x98] sm:%s176] %v223
                %v225 = vld [vmem:[%s183 + $0x1a0] sm:%s176]
                %226 = vst [vmem:[%s184 + $0xa0] sm:%s176] %v225
                %v227 = vld [vmem:[%s183 + $0x1a8] sm:%s176]
                %228 = vst [vmem:[%s184 + $0xa8] sm:%s176] %v227
                %v229 = vld [vmem:[%s183 + $0x1b0] sm:%s176]
                %230 = vst [vmem:[%s184 + $0xb0] sm:%s176] %v229
                %v231 = vld [vmem:[%s183 + $0x1b8] sm:%s176]
                %232 = vst [vmem:[%s184 + $0xb8] sm:%s176] %v231
                %v233 = vld [vmem:[%s183 + $0x1c0] sm:%s176]
                %234 = vst [vmem:[%s184 + $0xc0] sm:%s176] %v233
                %v235 = vld [vmem:[%s183 + $0x1c8] sm:%s176]
                %236 = vst [vmem:[%s184 + $0xc8] sm:%s176] %v235
                %v237 = vld [vmem:[%s183 + $0x1d0] sm:%s176]
                %238 = vst [vmem:[%s184 + $0xd0] sm:%s176] %v237
                %v239 = vld [vmem:[%s183 + $0x1d8] sm:%s176]
                %240 = vst [vmem:[%s184 + $0xd8] sm:%s176] %v239
                %v241 = vld [vmem:[%s183 + $0x1e0] sm:%s176]
                %242 = vst [vmem:[%s184 + $0xe0] sm:%s176] %v241
                %v243 = vld [vmem:[%s183 + $0x1e8] sm:%s176]
                %244 = vst [vmem:[%s184 + $0xe8] sm:%s176] %v243
                %v245 = vld [vmem:[%s183 + $0x1f0] sm:%s176]
                %246 = vst [vmem:[%s184 + $0xf0] sm:%s176] %v245
                %v247 = vld [vmem:[%s183 + $0x1f8] sm:%s176]
                %248 = vst [vmem:[%s184 + $0xf8] sm:%s176] %v247
                %v249 = vld [vmem:[%s183 + $0x300] sm:%s176]
                %250 = vst [vmem:[%s184 + $0x100] sm:%s176] %v249
                %v251 = vld [vmem:[%s183 + $0x308] sm:%s176]
                %252 = vst [vmem:[%s184 + $0x108] sm:%s176] %v251
                %v253 = vld [vmem:[%s183 + $0x310] sm:%s176]
                %254 = vst [vmem:[%s184 + $0x110] sm:%s176] %v253
                %v255 = vld [vmem:[%s183 + $0x318] sm:%s176]
                %256 = vst [vmem:[%s184 + $0x118] sm:%s176] %v255
                %v257 = vld [vmem:[%s183 + $0x320] sm:%s176]
                %258 = vst [vmem:[%s184 + $0x120] sm:%s176] %v257
                %v259 = vld [vmem:[%s183 + $0x328] sm:%s176]
                %260 = vst [vmem:[%s184 + $0x128] sm:%s176] %v259
                %v261 = vld [vmem:[%s183 + $0x330] sm:%s176]
                %262 = vst [vmem:[%s184 + $0x130] sm:%s176] %v261
                %v263 = vld [vmem:[%s183 + $0x338] sm:%s176]
                %264 = vst [vmem:[%s184 + $0x138] sm:%s176] %v263
                %v265 = vld [vmem:[%s183 + $0x340] sm:%s176]
                %266 = vst [vmem:[%s184 + $0x140] sm:%s176] %v265
                %v267 = vld [vmem:[%s183 + $0x348] sm:%s176]
                %268 = vst [vmem:[%s184 + $0x148] sm:%s176] %v267
                %v269 = vld [vmem:[%s183 + $0x350] sm:%s176]
                %270 = vst [vmem:[%s184 + $0x150] sm:%s176] %v269
                %v271 = vld [vmem:[%s183 + $0x358] sm:%s176]
                %272 = vst [vmem:[%s184 + $0x158] sm:%s176] %v271
                %v273 = vld [vmem:[%s183 + $0x360] sm:%s176]
                %274 = vst [vmem:[%s184 + $0x160] sm:%s176] %v273
                %v275 = vld [vmem:[%s183 + $0x368] sm:%s176]
                %276 = vst [vmem:[%s184 + $0x168] sm:%s176] %v275
                %v277 = vld [vmem:[%s183 + $0x370] sm:%s176]
                %278 = vst [vmem:[%s184 + $0x170] sm:%s176] %v277
                %v279 = vld [vmem:[%s183 + $0x378] sm:%s176]
                %280 = vst [vmem:[%s184 + $0x178] sm:%s176] %v279
                %v281 = vld [vmem:[%s183 + $0x480] sm:%s176]
                %282 = vst [vmem:[%s184 + $0x180] sm:%s176] %v281
                %v283 = vld [vmem:[%s183 + $0x488] sm:%s176]
                %284 = vst [vmem:[%s184 + $0x188] sm:%s176] %v283
                %v285 = vld [vmem:[%s183 + $0x490] sm:%s176]
                %286 = vst [vmem:[%s184 + $0x190] sm:%s176] %v285
                %v287 = vld [vmem:[%s183 + $0x498] sm:%s176]
                %288 = vst [vmem:[%s184 + $0x198] sm:%s176] %v287
                %v289 = vld [vmem:[%s183 + $0x4a0] sm:%s176]
                %290 = vst [vmem:[%s184 + $0x1a0] sm:%s176] %v289
                %v291 = vld [vmem:[%s183 + $0x4a8] sm:%s176]
                %292 = vst [vmem:[%s184 + $0x1a8] sm:%s176] %v291
                %v293 = vld [vmem:[%s183 + $0x4b0] sm:%s176]
                %294 = vst [vmem:[%s184 + $0x1b0] sm:%s176] %v293
                %v295 = vld [vmem:[%s183 + $0x4b8] sm:%s176]
                %296 = vst [vmem:[%s184 + $0x1b8] sm:%s176] %v295
                %v297 = vld [vmem:[%s183 + $0x4c0] sm:%s176]
                %298 = vst [vmem:[%s184 + $0x1c0] sm:%s176] %v297
                %v299 = vld [vmem:[%s183 + $0x4c8] sm:%s176]
                %300 = vst [vmem:[%s184 + $0x1c8] sm:%s176] %v299
                %v301 = vld [vmem:[%s183 + $0x4d0] sm:%s176]
                %302 = vst [vmem:[%s184 + $0x1d0] sm:%s176] %v301
                %v303 = vld [vmem:[%s183 + $0x4d8] sm:%s176]
                %304 = vst [vmem:[%s184 + $0x1d8] sm:%s176] %v303
                %v305 = vld [vmem:[%s183 + $0x4e0] sm:%s176]
                %306 = vst [vmem:[%s184 + $0x1e0] sm:%s176] %v305
                %v307 = vld [vmem:[%s183 + $0x4e8] sm:%s176]
                %308 = vst [vmem:[%s184 + $0x1e8] sm:%s176] %v307
                %v309 = vld [vmem:[%s183 + $0x4f0] sm:%s176]
                %310 = vst [vmem:[%s184 + $0x1f0] sm:%s176] %v309
                %v311 = vld [vmem:[%s183 + $0x4f8] sm:%s176]
                %312 = vst [vmem:[%s184 + $0x1f8] sm:%s176] %v311
              $region41: #{tpu_custom_call.1} parent=35 // loop_footer
                %s182 = sadd.s32 1, %s178
              $region42: #{tpu_custom_call.1} parent=35 // loop_footer_branch
                %177 = sbr.rel target = $region38
              $region43: #{tpu_custom_call.1} parent=35 // loop_exit
                _
            $region36: #{tpu_custom_call.1} parent=27 // pred_fallthru
              _
          $region28: #{tpu_custom_call.1} parent=23 // pred_fallthru
            _
          %453 = vnop
        $region24: #{tpu_custom_call.1} parent=19 // pred_fallthru
          _
        // Predicated region
        $region59: #{tpu_custom_call.1} parent=19 // pred_check
          %p454 = pneg %p97
        $region60: #{tpu_custom_call.1} parent=19 // pred_check_branch
          %456 = sbr.rel (%p454) target = $region62
        $region61: #{tpu_custom_call.1} parent=19 // pred_region
          %s457 = sand.u32 %s87, 1
          %s458 = sand.u32 %s87, 1
          %s459 = smul.addr %s458, 4
          %s460 = scalar_lea.vmem [#allocation3], %s459
          %s461 = smul.u32 4, %s16
          %s462 = smul.addr %s461, 3
          %s463 = sadd.s32 %s17, %s462
          %s464 = scalar_lea.vmem %s2, %s463
          // Predicated region
          $region63: #{tpu_custom_call.1} parent=61 // pred_check
            _
          $region64: #{tpu_custom_call.1} parent=61 // pred_check_branch
            %466 = sbr.rel (0) target = $region66
          $region65: #{tpu_custom_call.1} parent=61 // pred_region
            // Predicated region
            $region67: #{tpu_custom_call.1} parent=65 // pred_check
              _
            $region68: #{tpu_custom_call.1} parent=65 // pred_check_branch
              %468 = sbr.rel target = $region70
            $region69: #{tpu_custom_call.1} parent=65 // pred_region
              // Predicated region
              $region82: #{tpu_custom_call.1} parent=69 // pred_check
                _
              $region83: #{tpu_custom_call.1} parent=69 // pred_check_branch
                %490 = sbr.rel (0) target = $region85
              $region84: #{tpu_custom_call.1} parent=69 // pred_region
                %s492 = ssub.s32 2, 1
                loop: start=0, step=1, limit=1
                $region86: #{tpu_custom_call.1} parent=84 // loop_pre_header
                  _
                $region87: #{tpu_custom_call.1} parent=84 // loop_header
                  %s494 = sphi 0, %s498
                  %p495 = scmp.ge.s32.totalorder %s494, 1
                  %s499 = sphi %s464, %s464
                  %s500 = sphi %s460, %s460
                $region88: #{tpu_custom_call.1} parent=84 // loop_header_branch
                  %497 = sbr.rel (%p495) target = $region92
                $region89: #{tpu_custom_call.1} parent=84 // loop_body
                  %v501 = vld [vmem:[%s499] sm:%s492]
                  %502 = vst [vmem:[%s500] sm:%s492] %v501
                  %v503 = vld [vmem:[%s499 + $0x3] sm:%s492]
                  %504 = vst [vmem:[%s500 + $0x1] sm:%s492] %v503
                  %v505 = vld [vmem:[%s499 + $0x6] sm:%s492]
                  %506 = vst [vmem:[%s500 + $0x2] sm:%s492] %v505
                  %v507 = vld [vmem:[%s499 + $0x9] sm:%s492]
                  %508 = vst [vmem:[%s500 + $0x3] sm:%s492] %v507
                $region90: #{tpu_custom_call.1} parent=84 // loop_footer
                  %s498 = sadd.s32 1, %s494
                $region91: #{tpu_custom_call.1} parent=84 // loop_footer_branch
                  %493 = sbr.rel target = $region87
                $region92: #{tpu_custom_call.1} parent=84 // loop_exit
                  _
              $region85: #{tpu_custom_call.1} parent=69 // pred_fallthru
                _
            $region70: #{tpu_custom_call.1} parent=65 // pred_fallthru
              _
            // Predicated region
            $region71: #{tpu_custom_call.1} parent=65 // pred_check
              _
            $region72: #{tpu_custom_call.1} parent=65 // pred_check_branch
              %470 = sbr.rel (0) target = $region74
            $region73: #{tpu_custom_call.1} parent=65 // pred_region
              %s472 = ssub.s32 2, 1
              loop: start=0, step=1, limit=1
              $region75: #{tpu_custom_call.1} parent=73 // loop_pre_header
                _
              $region76: #{tpu_custom_call.1} parent=73 // loop_header
                %s474 = sphi 0, %s478
                %p475 = scmp.ge.s32.totalorder %s474, 1
                %s479 = sphi %s464, %s464
                %s480 = sphi %s460, %s460
              $region77: #{tpu_custom_call.1} parent=73 // loop_header_branch
                %477 = sbr.rel (%p475) target = $region81
              $region78: #{tpu_custom_call.1} parent=73 // loop_body
                %v481 = vld [vmem:[%s479] sm:%s472]
                %482 = vst [vmem:[%s480] sm:%s472] %v481
                %v483 = vld [vmem:[%s479 + $0x3] sm:%s472]
                %484 = vst [vmem:[%s480 + $0x1] sm:%s472] %v483
                %v485 = vld [vmem:[%s479 + $0x6] sm:%s472]
                %486 = vst [vmem:[%s480 + $0x2] sm:%s472] %v485
                %v487 = vld [vmem:[%s479 + $0x9] sm:%s472]
                %488 = vst [vmem:[%s480 + $0x3] sm:%s472] %v487
              $region79: #{tpu_custom_call.1} parent=73 // loop_footer
                %s478 = sadd.s32 1, %s474
              $region80: #{tpu_custom_call.1} parent=73 // loop_footer_branch
                %473 = sbr.rel target = $region76
              $region81: #{tpu_custom_call.1} parent=73 // loop_exit
                _
            $region74: #{tpu_custom_call.1} parent=65 // pred_fallthru
              _
          $region66: #{tpu_custom_call.1} parent=61 // pred_fallthru
            _
          %509 = vnop
        $region62: #{tpu_custom_call.1} parent=19 // pred_fallthru
          _
      $region20: #{tpu_custom_call.1} parent=5 // pred_fallthru
        _
      %p510 = scmp.le.s32.totalorder 1, %s9
      %p511 = scmp.lt.s32.totalorder %s9, 4
      %p512 = pnand %p510, %p511
      %p513 = pneg %p512
      // Predicated region
      $region93: #{tpu_custom_call.1} parent=5 // pred_check
        _
      $region94: #{tpu_custom_call.1} parent=5 // pred_check_branch
        %515 = sbr.rel (%p512) target = $region96
      $region95: #{tpu_custom_call.1} parent=5 // pred_region
        %s516 = ssub.s32 %s9, 1
        %s517 = sand.u32 %s62, 1
        %s518 = sand.u32 %s62, 1
        %s519 = smul.addr %s518, 512
        %s520 = scalar_lea.vmem [#allocation2], %s519
        // Predicated region
        $region97: #{tpu_custom_call.1} parent=95 // pred_check
          %p521 = pneg %p75
        $region98: #{tpu_custom_call.1} parent=95 // pred_check_branch
          %523 = sbr.rel (%p521) target = $region100
        $region99: #{tpu_custom_call.1} parent=95 // pred_region
          _
        $region100: #{tpu_custom_call.1} parent=95 // pred_fallthru
          _
        %s524 = sand.u32 %s90, 1
        %s525 = sand.u32 %s90, 1
        %s526 = smul.addr %s525, 4
        %s527 = scalar_lea.vmem [#allocation3], %s526
        // Predicated region
        $region101: #{tpu_custom_call.1} parent=95 // pred_check
          %p528 = pneg %p103
        $region102: #{tpu_custom_call.1} parent=95 // pred_check_branch
          %530 = sbr.rel (%p528) target = $region104
        $region103: #{tpu_custom_call.1} parent=95 // pred_region
          _
        $region104: #{tpu_custom_call.1} parent=95 // pred_fallthru
          _
        %s531 = smul.u32 4, %s18
        %p532 = scmp.lt.s32.totalorder %s531, 3
        %s533 = scalar_select %p532, %s531, 3
        %s534 = scalar_lea.vmem %s0, %s533
        %p535 = pneg %p47
        %p536 = pneg %p44
        %s537 = sand.u32 %s62, 1
        %s538 = sand.u32 %s62, 1
        %s539 = smul.addr %s538, 512
        %s540 = scalar_lea.vmem [#allocation2], %s539
        %p541 = pneg %p75
        %p542 = pneg %p72
        %s543 = sand.u32 %s90, 1
        %s544 = sand.u32 %s90, 1
        %s545 = smul.addr %s544, 4
        %s546 = scalar_lea.vmem [#allocation3], %s545
        %p547 = pneg %p103
        %p548 = pneg %p100
        %p549 = pneg %p129
        %p550 = pneg %p126
        %s551 = smul.u32 4, %s18
        %p552 = scmp.lt.s32.totalorder %s551, 3
        %s553 = scalar_select %p552, %s551, 3
        %s554 = scalar_lea.vmem %s3, %s553
        %s555 = smul.u32 4, %s18
        %p556 = scmp.lt.s32.totalorder %s555, 3
        %s557 = scalar_select %p556, %s555, 3
        %s558 = scalar_lea.vmem %s0, %s557
        %s559 = smul.u32 4, %s18
        %s560 = smul.u32 4, %s18
        %s561 = smul.u32 16, %s19
        %s562 = smul.u32 4, %s18
        %s563 = smul.u32 4, %s18
        %p564 = scmp.lt.s32.totalorder %s563, 3
        %s565 = scalar_select %p564, %s563, 3
        %s566 = scalar_lea.vmem %s3, %s565
        %s567 = smul.u32 4, %s18
        %p568 = scmp.eq.s32.totalorder %s19, 0
        // Predicated region
        $region105: #{tpu_custom_call.1} parent=95 // pred_check
          %p569 = pneg %p568
        $region106: #{tpu_custom_call.1} parent=95 // pred_check_branch
          %571 = sbr.rel (%p569) target = $region108
        $region107: #{tpu_custom_call.1} parent=95 // pred_region
          %vm572 = vcmask 0
          %573 = vst.msk [vmem:[%s566] sm:$0x1] %vm572, -inf
          %574 = vst.msk [vmem:[%s566 + $0x1] sm:$0x1] %vm572, -inf
          %575 = vst.msk [vmem:[%s566 + $0x2] sm:$0x1] %vm572, -inf
          %576 = vst.msk [vmem:[%s566 + $0x3] sm:$0x1] %vm572, -inf
        $region108: #{tpu_custom_call.1} parent=95 // pred_fallthru
          _
        %v577 = vld [vmem:[%s520] sm:$0xff]
        %v578 = vld [vmem:[%s520 + $0x8] sm:$0xff]
        %v579 = vld [vmem:[%s520 + $0x10] sm:$0xff]
        %v580 = vld [vmem:[%s520 + $0x18] sm:$0xff]
        %v581 = vld [vmem:[%s520 + $0x20] sm:$0xff]
        %v582 = vld [vmem:[%s520 + $0x28] sm:$0xff]
        %v583 = vld [vmem:[%s520 + $0x30] sm:$0xff]
        %v584 = vld [vmem:[%s520 + $0x38] sm:$0xff]
        %v585 = vld [vmem:[%s520 + $0x40] sm:$0xff]
        %v586 = vld [vmem:[%s520 + $0x48] sm:$0xff]
        %v587 = vld [vmem:[%s520 + $0x50] sm:$0xff]
        %v588 = vld [vmem:[%s520 + $0x58] sm:$0xff]
        %v589 = vld [vmem:[%s520 + $0x60] sm:$0xff]
        %v590 = vld [vmem:[%s520 + $0x68] sm:$0xff]
        %v591 = vld [vmem:[%s520 + $0x70] sm:$0xff]
        %v592 = vld [vmem:[%s520 + $0x78] sm:$0xff]
        %v593 = vld [vmem:[%s520 + $0x80] sm:$0xff]
        %v594 = vld [vmem:[%s520 + $0x88] sm:$0xff]
        %v595 = vld [vmem:[%s520 + $0x90] sm:$0xff]
        %v596 = vld [vmem:[%s520 + $0x98] sm:$0xff]
        %v597 = vld [vmem:[%s520 + $0xa0] sm:$0xff]
        %v598 = vld [vmem:[%s520 + $0xa8] sm:$0xff]
        %v599 = vld [vmem:[%s520 + $0xb0] sm:$0xff]
        %v600 = vld [vmem:[%s520 + $0xb8] sm:$0xff]
        %v601 = vld [vmem:[%s520 + $0xc0] sm:$0xff]
        %v602 = vld [vmem:[%s520 + $0xc8] sm:$0xff]
        %v603 = vld [vmem:[%s520 + $0xd0] sm:$0xff]
        %v604 = vld [vmem:[%s520 + $0xd8] sm:$0xff]
        %v605 = vld [vmem:[%s520 + $0xe0] sm:$0xff]
        %v606 = vld [vmem:[%s520 + $0xe8] sm:$0xff]
        %v607 = vld [vmem:[%s520 + $0xf0] sm:$0xff]
        %v608 = vld [vmem:[%s520 + $0xf8] sm:$0xff]
        %v609 = vld [vmem:[%s520 + $0x100] sm:$0xff]
        %v610 = vld [vmem:[%s520 + $0x108] sm:$0xff]
        %v611 = vld [vmem:[%s520 + $0x110] sm:$0xff]
        %v612 = vld [vmem:[%s520 + $0x118] sm:$0xff]
        %v613 = vld [vmem:[%s520 + $0x120] sm:$0xff]
        %v614 = vld [vmem:[%s520 + $0x128] sm:$0xff]
        %v615 = vld [vmem:[%s520 + $0x130] sm:$0xff]
        %v616 = vld [vmem:[%s520 + $0x138] sm:$0xff]
        %v617 = vld [vmem:[%s520 + $0x140] sm:$0xff]
        %v618 = vld [vmem:[%s520 + $0x148] sm:$0xff]
        %v619 = vld [vmem:[%s520 + $0x150] sm:$0xff]
        %v620 = vld [vmem:[%s520 + $0x158] sm:$0xff]
        %v621 = vld [vmem:[%s520 + $0x160] sm:$0xff]
        %v622 = vld [vmem:[%s520 + $0x168] sm:$0xff]
        %v623 = vld [vmem:[%s520 + $0x170] sm:$0xff]
        %v624 = vld [vmem:[%s520 + $0x178] sm:$0xff]
        %v625 = vld [vmem:[%s520 + $0x180] sm:$0xff]
        %v626 = vld [vmem:[%s520 + $0x188] sm:$0xff]
        %v627 = vld [vmem:[%s520 + $0x190] sm:$0xff]
        %v628 = vld [vmem:[%s520 + $0x198] sm:$0xff]
        %v629 = vld [vmem:[%s520 + $0x1a0] sm:$0xff]
        %v630 = vld [vmem:[%s520 + $0x1a8] sm:$0xff]
        %v631 = vld [vmem:[%s520 + $0x1b0] sm:$0xff]
        %v632 = vld [vmem:[%s520 + $0x1b8] sm:$0xff]
        %v633 = vld [vmem:[%s520 + $0x1c0] sm:$0xff]
        %v634 = vld [vmem:[%s520 + $0x1c8] sm:$0xff]
        %v635 = vld [vmem:[%s520 + $0x1d0] sm:$0xff]
        %v636 = vld [vmem:[%s520 + $0x1d8] sm:$0xff]
        %v637 = vld [vmem:[%s520 + $0x1e0] sm:$0xff]
        %v638 = vld [vmem:[%s520 + $0x1e8] sm:$0xff]
        %v639 = vld [vmem:[%s520 + $0x1f0] sm:$0xff]
        %v640 = vld [vmem:[%s520 + $0x1f8] sm:$0xff]
        %v641 = vld [vmem:[%s558] sm:$0x1]
        %v642 = vld [vmem:[%s558 + $0x1] sm:$0x1]
        %v643 = vld [vmem:[%s558 + $0x2] sm:$0x1]
        %v644 = vld [vmem:[%s558 + $0x3] sm:$0x1]
        %v645 = vld [vmem:[%s527] sm:$0x1]
        %v646 = vld [vmem:[%s527 + $0x1] sm:$0x1]
        %v647 = vld [vmem:[%s527 + $0x2] sm:$0x1]
        %v648 = vld [vmem:[%s527 + $0x3] sm:$0x1]
        %v649 = vunpack.c.l.bf16 %v645
        %v650 = vunpack.c.l.bf16 %v646
        %v651 = vunpack.c.l.bf16 %v647
        %v652 = vunpack.c.l.bf16 %v648
        %vm653 = vcmask 523264
        %v655 = vsel %vm653, %v641, 0
        %v658 = vsel %vm653, %v577, 0
        %v661 = vsel %vm653, %v578, 0
        %v664 = vsel %vm653, %v579, 0
        %v667 = vsel %vm653, %v580, 0
        %v670 = vsel %vm653, %v581, 0
        %v673 = vsel %vm653, %v582, 0
        %v676 = vsel %vm653, %v583, 0
        %v679 = vsel %vm653, %v584, 0
        %v682 = vsel %vm653, %v585, 0
        %v685 = vsel %vm653, %v586, 0
        %v688 = vsel %vm653, %v587, 0
        %v691 = vsel %vm653, %v588, 0
        %v694 = vsel %vm653, %v589, 0
        %v697 = vsel %vm653, %v590, 0
        %v700 = vsel %vm653, %v591, 0
        %v703 = vsel %vm653, %v592, 0
        %705 = vmatprep.subr.mxu0 0.0
        %706 = vmatpush1.xpose.msra.mxu0 %v703
        %707 = vmatprep.subr.mxu0 0.0
        %708 = vmatpush1.xpose.msra.mxu0 %v700
        %709 = vmatprep.subr.mxu0 0.0
        %710 = vmatpush1.xpose.msra.mxu0 %v697
        %711 = vmatprep.subr.mxu0 0.0
        %712 = vmatpush1.xpose.msra.mxu0 %v694
        %713 = vmatprep.subr.mxu0 0.0
        %714 = vmatpush1.xpose.msra.mxu0 %v691
        %715 = vmatprep.subr.mxu0 0.0
        %716 = vmatpush1.xpose.msra.mxu0 %v688
        %717 = vmatprep.subr.mxu0 0.0
        %718 = vmatpush1.xpose.msra.mxu0 %v685
        %719 = vmatprep.subr.mxu0 0.0
        %720 = vmatpush1.xpose.msra.mxu0 %v682
        %721 = vmatprep.subr.mxu0 0.0
        %722 = vmatpush1.xpose.msra.mxu0 %v679
        %723 = vmatprep.subr.mxu0 0.0
        %724 = vmatpush1.xpose.msra.mxu0 %v676
        %725 = vmatprep.subr.mxu0 0.0
        %726 = vmatpush1.xpose.msra.mxu0 %v673
        %727 = vmatprep.subr.mxu0 0.0
        %728 = vmatpush1.xpose.msra.mxu0 %v670
        %729 = vmatprep.subr.mxu0 0.0
        %730 = vmatpush1.xpose.msra.mxu0 %v667
        %731 = vmatprep.subr.mxu0 0.0
        %732 = vmatpush1.xpose.msra.mxu0 %v664
        %733 = vmatprep.subr.mxu0 0.0
        %734 = vmatpush1.xpose.msra.mxu0 %v661
        %735 = vmatprep.subr.mxu0 0.0
        %736 = vmatpush1.xpose.msra.mxu0 %v658
        %737 = vmatprep.subr.mxu0 0.0
        %738 = vmatpush2.xpose.msra.mxu0 0.0
        %739 = vmatprep.subr.mxu0 0.0
        %740 = vmatpush2.xpose.msra.mxu0 0.0
        %741 = vmatprep.subr.mxu0 0.0
        %742 = vmatpush2.xpose.msra.mxu0 0.0
        %743 = vmatprep.subr.mxu0 0.0
        %744 = vmatpush2.xpose.msra.mxu0 0.0
        %745 = vmatprep.subr.mxu0 0.0
        %746 = vmatpush2.xpose.msra.mxu0 0.0
        %747 = vmatprep.subr.mxu0 0.0
        %748 = vmatpush2.xpose.msra.mxu0 0.0
        %749 = vmatprep.subr.mxu0 0.0
        %750 = vmatpush2.xpose.msra.mxu0 0.0
        %751 = vmatprep.subr.mxu0 0.0
        %752 = vmatpush2.xpose.msra.mxu0 0.0
        %753 = vmatprep.subr.mxu0 0.0
        %754 = vmatpush2.xpose.msra.mxu0 0.0
        %755 = vmatprep.subr.mxu0 0.0
        %756 = vmatpush2.xpose.msra.mxu0 0.0
        %757 = vmatprep.subr.mxu0 0.0
        %758 = vmatpush2.xpose.msra.mxu0 0.0
        %759 = vmatprep.subr.mxu0 0.0
        %760 = vmatpush2.xpose.msra.mxu0 0.0
        %761 = vmatprep.subr.mxu0 0.0
        %762 = vmatpush2.xpose.msra.mxu0 0.0
        %763 = vmatprep.subr.mxu0 0.0
        %764 = vmatpush2.xpose.msra.mxu0 0.0
        %765 = vmatprep.subr.mxu0 0.0
        %766 = vmatpush2.xpose.msra.mxu0 0.0
        %767 = vmatprep.subr.mxu0 0.0
        %768 = vmatpush2.xpose.msra.mxu0 0.0
        %769 = vmatprep.mubr.f32.mxu0 0.0
        %770 = vmatmul.mubr.f32.gmra.mxu0 %v655
        %v771 = vpop.f32.mrf.mxu0
        %v772 = vadd.f32 %v649, %v771
        %v773 = vpop.f32.mrf.mxu0
        %774 = vdwg.mxu0
        %v776 = vsel %vm653, %v642, 0
        %v779 = vsel %vm653, %v593, 0
        %v782 = vsel %vm653, %v594, 0
        %v785 = vsel %vm653, %v595, 0
        %v788 = vsel %vm653, %v596, 0
        %v791 = vsel %vm653, %v597, 0
        %v794 = vsel %vm653, %v598, 0
        %v797 = vsel %vm653, %v599, 0
        %v800 = vsel %vm653, %v600, 0
        %v803 = vsel %vm653, %v601, 0
        %v806 = vsel %vm653, %v602, 0
        %v809 = vsel %vm653, %v603, 0
        %v812 = vsel %vm653, %v604, 0
        %v815 = vsel %vm653, %v605, 0
        %v818 = vsel %vm653, %v606, 0
        %v821 = vsel %vm653, %v607, 0
        %v824 = vsel %vm653, %v608, 0
        %826 = vmatprep.subr.mxu0 0.0
        %827 = vmatpush1.xpose.msra.mxu0 %v824
        %828 = vmatprep.subr.mxu0 0.0
        %829 = vmatpush1.xpose.msra.mxu0 %v821
        %830 = vmatprep.subr.mxu0 0.0
        %831 = vmatpush1.xpose.msra.mxu0 %v818
        %832 = vmatprep.subr.mxu0 0.0
        %833 = vmatpush1.xpose.msra.mxu0 %v815
        %834 = vmatprep.subr.mxu0 0.0
        %835 = vmatpush1.xpose.msra.mxu0 %v812
        %836 = vmatprep.subr.mxu0 0.0
        %837 = vmatpush1.xpose.msra.mxu0 %v809
        %838 = vmatprep.subr.mxu0 0.0
        %839 = vmatpush1.xpose.msra.mxu0 %v806
        %840 = vmatprep.subr.mxu0 0.0
        %841 = vmatpush1.xpose.msra.mxu0 %v803
        %842 = vmatprep.subr.mxu0 0.0
        %843 = vmatpush1.xpose.msra.mxu0 %v800
        %844 = vmatprep.subr.mxu0 0.0
        %845 = vmatpush1.xpose.msra.mxu0 %v797
        %846 = vmatprep.subr.mxu0 0.0
        %847 = vmatpush1.xpose.msra.mxu0 %v794
        %848 = vmatprep.subr.mxu0 0.0
        %849 = vmatpush1.xpose.msra.mxu0 %v791
        %850 = vmatprep.subr.mxu0 0.0
        %851 = vmatpush1.xpose.msra.mxu0 %v788
        %852 = vmatprep.subr.mxu0 0.0
        %853 = vmatpush1.xpose.msra.mxu0 %v785
        %854 = vmatprep.subr.mxu0 0.0
        %855 = vmatpush1.xpose.msra.mxu0 %v782
        %856 = vmatprep.subr.mxu0 0.0
        %857 = vmatpush1.xpose.msra.mxu0 %v779
        %858 = vmatprep.subr.mxu0 0.0
        %859 = vmatpush2.xpose.msra.mxu0 0.0
        %860 = vmatprep.subr.mxu0 0.0
        %861 = vmatpush2.xpose.msra.mxu0 0.0
        %862 = vmatprep.subr.mxu0 0.0
        %863 = vmatpush2.xpose.msra.mxu0 0.0
        %864 = vmatprep.subr.mxu0 0.0
        %865 = vmatpush2.xpose.msra.mxu0 0.0
        %866 = vmatprep.subr.mxu0 0.0
        %867 = vmatpush2.xpose.msra.mxu0 0.0
        %868 = vmatprep.subr.mxu0 0.0
        %869 = vmatpush2.xpose.msra.mxu0 0.0
        %870 = vmatprep.subr.mxu0 0.0
        %871 = vmatpush2.xpose.msra.mxu0 0.0
        %872 = vmatprep.subr.mxu0 0.0
        %873 = vmatpush2.xpose.msra.mxu0 0.0
        %874 = vmatprep.subr.mxu0 0.0
        %875 = vmatpush2.xpose.msra.mxu0 0.0
        %876 = vmatprep.subr.mxu0 0.0
        %877 = vmatpush2.xpose.msra.mxu0 0.0
        %878 = vmatprep.subr.mxu0 0.0
        %879 = vmatpush2.xpose.msra.mxu0 0.0
        %880 = vmatprep.subr.mxu0 0.0
        %881 = vmatpush2.xpose.msra.mxu0 0.0
        %882 = vmatprep.subr.mxu0 0.0
        %883 = vmatpush2.xpose.msra.mxu0 0.0
        %884 = vmatprep.subr.mxu0 0.0
        %885 = vmatpush2.xpose.msra.mxu0 0.0
        %886 = vmatprep.subr.mxu0 0.0
        %887 = vmatpush2.xpose.msra.mxu0 0.0
        %888 = vmatprep.subr.mxu0 0.0
        %889 = vmatpush2.xpose.msra.mxu0 0.0
        %890 = vmatprep.mubr.f32.mxu0 0.0
        %891 = vmatmul.mubr.f32.gmra.mxu0 %v776
        %v892 = vpop.f32.mrf.mxu0
        %v893 = vadd.f32 %v650, %v892
        %v894 = vpop.f32.mrf.mxu0
        %895 = vdwg.mxu0
        %v897 = vsel %vm653, %v643, 0
        %v900 = vsel %vm653, %v609, 0
        %v903 = vsel %vm653, %v610, 0
        %v906 = vsel %vm653, %v611, 0
        %v909 = vsel %vm653, %v612, 0
        %v912 = vsel %vm653, %v613, 0
        %v915 = vsel %vm653, %v614, 0
        %v918 = vsel %vm653, %v615, 0
        %v921 = vsel %vm653, %v616, 0
        %v924 = vsel %vm653, %v617, 0
        %v927 = vsel %vm653, %v618, 0
        %v930 = vsel %vm653, %v619, 0
        %v933 = vsel %vm653, %v620, 0
        %v936 = vsel %vm653, %v621, 0
        %v939 = vsel %vm653, %v622, 0
        %v942 = vsel %vm653, %v623, 0
        %v945 = vsel %vm653, %v624, 0
        %947 = vmatprep.subr.mxu0 0.0
        %948 = vmatpush1.xpose.msra.mxu0 %v945
        %949 = vmatprep.subr.mxu0 0.0
        %950 = vmatpush1.xpose.msra.mxu0 %v942
        %951 = vmatprep.subr.mxu0 0.0
        %952 = vmatpush1.xpose.msra.mxu0 %v939
        %953 = vmatprep.subr.mxu0 0.0
        %954 = vmatpush1.xpose.msra.mxu0 %v936
        %955 = vmatprep.subr.mxu0 0.0
        %956 = vmatpush1.xpose.msra.mxu0 %v933
        %957 = vmatprep.subr.mxu0 0.0
        %958 = vmatpush1.xpose.msra.mxu0 %v930
        %959 = vmatprep.subr.mxu0 0.0
        %960 = vmatpush1.xpose.msra.mxu0 %v927
        %961 = vmatprep.subr.mxu0 0.0
        %962 = vmatpush1.xpose.msra.mxu0 %v924
        %963 = vmatprep.subr.mxu0 0.0
        %964 = vmatpush1.xpose.msra.mxu0 %v921
        %965 = vmatprep.subr.mxu0 0.0
        %966 = vmatpush1.xpose.msra.mxu0 %v918
        %967 = vmatprep.subr.mxu0 0.0
        %968 = vmatpush1.xpose.msra.mxu0 %v915
        %969 = vmatprep.subr.mxu0 0.0
        %970 = vmatpush1.xpose.msra.mxu0 %v912
        %971 = vmatprep.subr.mxu0 0.0
        %972 = vmatpush1.xpose.msra.mxu0 %v909
        %973 = vmatprep.subr.mxu0 0.0
        %974 = vmatpush1.xpose.msra.mxu0 %v906
        %975 = vmatprep.subr.mxu0 0.0
        %976 = vmatpush1.xpose.msra.mxu0 %v903
        %977 = vmatprep.subr.mxu0 0.0
        %978 = vmatpush1.xpose.msra.mxu0 %v900
        %979 = vmatprep.subr.mxu0 0.0
        %980 = vmatpush2.xpose.msra.mxu0 0.0
        %981 = vmatprep.subr.mxu0 0.0
        %982 = vmatpush2.xpose.msra.mxu0 0.0
        %983 = vmatprep.subr.mxu0 0.0
        %984 = vmatpush2.xpose.msra.mxu0 0.0
        %985 = vmatprep.subr.mxu0 0.0
        %986 = vmatpush2.xpose.msra.mxu0 0.0
        %987 = vmatprep.subr.mxu0 0.0
        %988 = vmatpush2.xpose.msra.mxu0 0.0
        %989 = vmatprep.subr.mxu0 0.0
        %990 = vmatpush2.xpose.msra.mxu0 0.0
        %991 = vmatprep.subr.mxu0 0.0
        %992 = vmatpush2.xpose.msra.mxu0 0.0
        %993 = vmatprep.subr.mxu0 0.0
        %994 = vmatpush2.xpose.msra.mxu0 0.0
        %995 = vmatprep.subr.mxu0 0.0
        %996 = vmatpush2.xpose.msra.mxu0 0.0
        %997 = vmatprep.subr.mxu0 0.0
        %998 = vmatpush2.xpose.msra.mxu0 0.0
        %999 = vmatprep.subr.mxu0 0.0
        %1000 = vmatpush2.xpose.msra.mxu0 0.0
        %1001 = vmatprep.subr.mxu0 0.0
        %1002 = vmatpush2.xpose.msra.mxu0 0.0
        %1003 = vmatprep.subr.mxu0 0.0
        %1004 = vmatpush2.xpose.msra.mxu0 0.0
        %1005 = vmatprep.subr.mxu0 0.0
        %1006 = vmatpush2.xpose.msra.mxu0 0.0
        %1007 = vmatprep.subr.mxu0 0.0
        %1008 = vmatpush2.xpose.msra.mxu0 0.0
        %1009 = vmatprep.subr.mxu0 0.0
        %1010 = vmatpush2.xpose.msra.mxu0 0.0
        %1011 = vmatprep.mubr.f32.mxu0 0.0
        %1012 = vmatmul.mubr.f32.gmra.mxu0 %v897
        %v1013 = vpop.f32.mrf.mxu0
        %v1014 = vadd.f32 %v651, %v1013
        %v1015 = vpop.f32.mrf.mxu0
        %1016 = vdwg.mxu0
        %v1018 = vsel %vm653, %v644, 0
        %v1021 = vsel %vm653, %v625, 0
        %v1024 = vsel %vm653, %v626, 0
        %v1027 = vsel %vm653, %v627, 0
        %v1030 = vsel %vm653, %v628, 0
        %v1033 = vsel %vm653, %v629, 0
        %v1036 = vsel %vm653, %v630, 0
        %v1039 = vsel %vm653, %v631, 0
        %v1042 = vsel %vm653, %v632, 0
        %v1045 = vsel %vm653, %v633, 0
        %v1048 = vsel %vm653, %v634, 0
        %v1051 = vsel %vm653, %v635, 0
        %v1054 = vsel %vm653, %v636, 0
        %v1057 = vsel %vm653, %v637, 0
        %v1060 = vsel %vm653, %v638, 0
        %v1063 = vsel %vm653, %v639, 0
        %v1066 = vsel %vm653, %v640, 0
        %1068 = vmatprep.subr.mxu0 0.0
        %1069 = vmatpush1.xpose.msra.mxu0 %v1066
        %1070 = vmatprep.subr.mxu0 0.0
        %1071 = vmatpush1.xpose.msra.mxu0 %v1063
        %1072 = vmatprep.subr.mxu0 0.0
        %1073 = vmatpush1.xpose.msra.mxu0 %v1060
        %1074 = vmatprep.subr.mxu0 0.0
        %1075 = vmatpush1.xpose.msra.mxu0 %v1057
        %1076 = vmatprep.subr.mxu0 0.0
        %1077 = vmatpush1.xpose.msra.mxu0 %v1054
        %1078 = vmatprep.subr.mxu0 0.0
        %1079 = vmatpush1.xpose.msra.mxu0 %v1051
        %1080 = vmatprep.subr.mxu0 0.0
        %1081 = vmatpush1.xpose.msra.mxu0 %v1048
        %1082 = vmatprep.subr.mxu0 0.0
        %1083 = vmatpush1.xpose.msra.mxu0 %v1045
        %1084 = vmatprep.subr.mxu0 0.0
        %1085 = vmatpush1.xpose.msra.mxu0 %v1042
        %1086 = vmatprep.subr.mxu0 0.0
        %1087 = vmatpush1.xpose.msra.mxu0 %v1039
        %1088 = vmatprep.subr.mxu0 0.0
        %1089 = vmatpush1.xpose.msra.mxu0 %v1036
        %1090 = vmatprep.subr.mxu0 0.0
        %1091 = vmatpush1.xpose.msra.mxu0 %v1033
        %1092 = vmatprep.subr.mxu0 0.0
        %1093 = vmatpush1.xpose.msra.mxu0 %v1030
        %1094 = vmatprep.subr.mxu0 0.0
        %1095 = vmatpush1.xpose.msra.mxu0 %v1027
        %1096 = vmatprep.subr.mxu0 0.0
        %1097 = vmatpush1.xpose.msra.mxu0 %v1024
        %1098 = vmatprep.subr.mxu0 0.0
        %1099 = vmatpush1.xpose.msra.mxu0 %v1021
        %1100 = vmatprep.subr.mxu0 0.0
        %1101 = vmatpush2.xpose.msra.mxu0 0.0
        %1102 = vmatprep.subr.mxu0 0.0
        %1103 = vmatpush2.xpose.msra.mxu0 0.0
        %1104 = vmatprep.subr.mxu0 0.0
        %1105 = vmatpush2.xpose.msra.mxu0 0.0
        %1106 = vmatprep.subr.mxu0 0.0
        %1107 = vmatpush2.xpose.msra.mxu0 0.0
        %1108 = vmatprep.subr.mxu0 0.0
        %1109 = vmatpush2.xpose.msra.mxu0 0.0
        %1110 = vmatprep.subr.mxu0 0.0
        %1111 = vmatpush2.xpose.msra.mxu0 0.0
        %1112 = vmatprep.subr.mxu0 0.0
        %1113 = vmatpush2.xpose.msra.mxu0 0.0
        %1114 = vmatprep.subr.mxu0 0.0
        %1115 = vmatpush2.xpose.msra.mxu0 0.0
        %1116 = vmatprep.subr.mxu0 0.0
        %1117 = vmatpush2.xpose.msra.mxu0 0.0
        %1118 = vmatprep.subr.mxu0 0.0
        %1119 = vmatpush2.xpose.msra.mxu0 0.0
        %1120 = vmatprep.subr.mxu0 0.0
        %1121 = vmatpush2.xpose.msra.mxu0 0.0
        %1122 = vmatprep.subr.mxu0 0.0
        %1123 = vmatpush2.xpose.msra.mxu0 0.0
        %1124 = vmatprep.subr.mxu0 0.0
        %1125 = vmatpush2.xpose.msra.mxu0 0.0
        %1126 = vmatprep.subr.mxu0 0.0
        %1127 = vmatpush2.xpose.msra.mxu0 0.0
        %1128 = vmatprep.subr.mxu0 0.0
        %1129 = vmatpush2.xpose.msra.mxu0 0.0
        %1130 = vmatprep.subr.mxu0 0.0
        %1131 = vmatpush2.xpose.msra.mxu0 0.0
        %1132 = vmatprep.mubr.f32.mxu0 0.0
        %1133 = vmatmul.mubr.f32.gmra.mxu0 %v1018
        %v1134 = vpop.f32.mrf.mxu0
        %v1135 = vadd.f32 %v652, %v1134
        %v1136 = vpop.f32.mrf.mxu0
        %1137 = vdwg.mxu0
        %v1138 = vld [vmem:[%s566] sm:$0x1]
        %v1139 = vld [vmem:[%s566 + $0x1] sm:$0x1]
        %v1140 = vld [vmem:[%s566 + $0x2] sm:$0x1]
        %v1141 = vld [vmem:[%s566 + $0x3] sm:$0x1]
        %vm1142 = vcmask 1040384
        %v1143 = vsel %vm1142, %v772, -inf
        %1144 = vmax.xlane.f32.xlu0 %v1143
        %v1145 = vpop.xlane.xlu0 %1144
        %v1146 = vsel %vm1142, %v893, -inf
        %1147 = vmax.xlane.f32.xlu0 %v1146
        %v1148 = vpop.xlane.xlu0 %1147
        %v1149 = vsel %vm1142, %v1014, -inf
        %1150 = vmax.xlane.f32.xlu0 %v1149
        %v1151 = vpop.xlane.xlu0 %1150
        %v1152 = vsel %vm1142, %v1135, -inf
        %1153 = vmax.xlane.f32.xlu0 %v1152
        %v1154 = vpop.xlane.xlu0 %1153
        %v1155 = vmax.f32 %v1138, %v1145
        %v1156 = vmax.f32 %v1139, %v1148
        %v1157 = vmax.f32 %v1140, %v1151
        %v1158 = vmax.f32 %v1141, %v1154
        %vm1159 = vcmask 0
        %1160 = vst.msk [vmem:[%s566] sm:$0x1] %vm1159, %v1155
        %1161 = vst.msk [vmem:[%s566 + $0x1] sm:$0x1] %vm1159, %v1156
        %1162 = vst.msk [vmem:[%s566 + $0x2] sm:$0x1] %vm1159, %v1157
        %1163 = vst.msk [vmem:[%s566 + $0x3] sm:$0x1] %vm1159, %v1158
        %s1164 = smul.u32 4, %s18
        %p1165 = scmp.lt.s32.totalorder %s1164, 3
        %s1166 = scalar_select %p1165, %s1164, 3
        %s1167 = scalar_lea.vmem %s3, %s1166
        // Predicated region
        $region109: #{tpu_custom_call.1} parent=95 // pred_check
          %p1168 = pneg %p126
        $region110: #{tpu_custom_call.1} parent=95 // pred_check_branch
          %1170 = sbr.rel (%p1168) target = $region112
        $region111: #{tpu_custom_call.1} parent=95 // pred_region
          %s1171 = smul.u32 4, %s18
        $region112: #{tpu_custom_call.1} parent=95 // pred_fallthru
          _
        // Predicated region
        $region113: #{tpu_custom_call.1} parent=95 // pred_check
          %p1172 = pneg %p126
        $region114: #{tpu_custom_call.1} parent=95 // pred_check_branch
          %1174 = sbr.rel (%p1172) target = $region116
        $region115: #{tpu_custom_call.1} parent=95 // pred_region
          %s1175 = smul.u32 4, %s18
          %p1176 = scmp.lt.s32.totalorder %s1175, 3
          %s1177 = scalar_select %p1176, %s1175, 3
          %s1178 = scalar_lea.vmem %s3, %s1177
        $region116: #{tpu_custom_call.1} parent=95 // pred_fallthru
          _
      $region96: #{tpu_custom_call.1} parent=5 // pred_fallthru
        _
      %p1179 = scmp.le.s32.totalorder 2, %s9
      // Predicated region
      $region117: #{tpu_custom_call.1} parent=5 // pred_check
        %p1180 = pneg %p1179
      $region118: #{tpu_custom_call.1} parent=5 // pred_check_branch
        %1182 = sbr.rel (%p1180) target = $region120
      $region119: #{tpu_custom_call.1} parent=5 // pred_region
        %s1183 = ssub.s32 %s9, 2
      $region120: #{tpu_custom_call.1} parent=5 // pred_fallthru
        _
    $region6: #{tpu_custom_call.1} parent=1 // loop_footer
      %s13 = sadd.s32 1, %s9
    $region7: #{tpu_custom_call.1} parent=1 // loop_footer_branch
      %8 = sbr.rel target = $region3
    $region8: #{tpu_custom_call.1} parent=1 // loop_exit
      _

</llo_original>
